<compile_context>
chip_gen: v5e
topology: v5e:2x2
jax: 0.10.0
libtpu: 0.0.40
codegen_flags: <defaults>
</compile_context>

<pallas_src>
import functools

import jax
import jax.numpy as jnp
from jax.experimental import pallas as pl
from jax.experimental.pallas import tpu as pltpu


def _round_up(x, m):
    return (x + m - 1) // m * m


def _make_kernel(inv_hw, n_hw, thw, eps=1e-5, neg_slope=0.1):
    """Kernel for one (batch, C_out-block); grid axis 2 sweeps HW tiles."""

    def kernel(p_ref, w_ref, gb_ref, o_ref, acc_ref, s1_ref, s2_ref):
        # p_ref : (K, THW)        bf16  im2col patches, HW tile on lanes
        # w_ref : (TCO, K)        bf16  conv weight rows for this C_out block
        # gb_ref: (TCO, 2)        f32   [:,0]=gamma, [:,1]=beta
        # o_ref : (TCO, HW_pad)         output block (resident across HW tiles)
        # acc   : (n_hw,TCO,THW)  f32   raw conv results
        # s1,s2 : (TCO, 1)        f32   running sum / sum of squares
        hw = pl.program_id(2)

        # 3x3 stride-2 conv tile = im2col matmul on the MXU, f32 accumulation.
        y = jnp.dot(w_ref[...], p_ref[...],
                    preferred_element_type=jnp.float32)          # (TCO, THW)
        acc_ref[hw] = y

        @pl.when(hw == 0)
        def _init():
            s1_ref[...] = jnp.zeros_like(s1_ref)
            s2_ref[...] = jnp.zeros_like(s2_ref)

        # XLU lane reductions (free slot vs. the VPU epilogue).
        s1_ref[...] += jnp.sum(y, axis=1, keepdims=True)
        s2_ref[...] += jnp.sum(y * y, axis=1, keepdims=True)

        @pl.when(hw == n_hw - 1)
        def _finalize():
            # InstanceNorm2d (biased variance, eps=1e-5), affine folded into a
            # single scale/shift.  Zero-padded HW lanes contribute nothing to
            # s1/s2 and inv_hw = 1/true_HW, so stats match the unpadded op.
            mean = s1_ref[...] * inv_hw
            var = jnp.maximum(s2_ref[...] * inv_hw - mean * mean, 0.0)
            scale = gb_ref[:, 0:1] * jax.lax.rsqrt(var + eps)
            shift = gb_ref[:, 1:2] - mean * scale
            for j in range(n_hw):                 # static unroll, 128-aligned
                yj = acc_ref[j]
                yn = yj * scale + shift
                o_ref[:, j * thw:(j + 1) * thw] = jnp.maximum(
                    yn, neg_slope * yn).astype(o_ref.dtype)

    return kernel


def conv3x3_forward(x, weight, gamma, beta, stride=2, out_dtype=None):
    """x: [N, C_in, H, W] (NCHW).  weight: [C_out, C_in, 3, 3] (no bias).

    Returns LeakyReLU(InstanceNorm(Conv2d(ReplicationPad2d(x)))), NCHW.
    Pass out_dtype=jnp.bfloat16 to halve output writeback when the consumer
    tolerates it (default keeps x.dtype to match the PyTorch module).
    """
    N, C_in, H, W = x.shape
    C_out = weight.shape[0]
    out_dtype = x.dtype if out_dtype is None else out_dtype
    out_bytes = jnp.dtype(out_dtype).itemsize

    # ReplicationPad2d([1, 1, 1, 1])
    xp = jnp.pad(x, ((0, 0), (0, 0), (1, 1), (1, 1)), mode="edge")
    Hp, Wp = H + 2, W + 2
    H_out = (Hp - 3) // stride + 1
    W_out = (Wp - 3) // stride + 1
    HW = H_out * W_out
    K = C_in * 9

    # ---- tile selection against an explicit VMEM budget --------------------
    # HW tile: multiple of 128; double-buffered bf16 patches stream <= ~8 MiB.
    thw = 2048
    while thw > 128 and 2 * (K * thw * 2) > 8 * 2**20:
        thw //= 2
    thw = min(thw, _round_up(HW, 128))
    hw_pad = _round_up(HW, thw)
    n_hw = hw_pad // thw

    # C_out tile: keep full C_out (avoids re-reading patches) unless the
    # resident f32 accumulator + double-buffered output block exceeds ~24 MiB.
    def _resident(co):
        return co * hw_pad * (4 + 2 * out_bytes)

    tco = C_out
    if _resident(tco) > 24 * 2**20 and C_out % 8 == 0:
        tco = 8
        for c in range(C_out - 8, 7, -8):
            if C_out % c == 0 and _resident(c) <= 24 * 2**20:
                tco = c
                break
    n_co = C_out // tco

    # ---- im2col in the [N, K, HW] layout the MXU wants (HW on lanes) -------
    cols = []
    for kh in range(3):
        for kw in range(3):
            cols.append(
                xp[:, :, kh:kh + stride * (H_out - 1) + 1:stride,
                          kw:kw + stride * (W_out - 1) + 1:stride])
    patches = jnp.stack(cols, axis=2).reshape(N, K, HW).astype(jnp.bfloat16)
    if hw_pad != HW:
        patches = jnp.pad(patches, ((0, 0), (0, 0), (0, hw_pad - HW)))

    w2d = weight.reshape(C_out, K).astype(jnp.bfloat16)
    gb = jnp.stack([gamma, beta], axis=1).astype(jnp.float32)     # (C_out, 2)

    vmem_need = (2 * K * thw * 2                 # patches, double-buffered bf16
                 + n_hw * tco * thw * 4          # f32 conv accumulator
                 + 2 * tco * hw_pad * out_bytes  # output block, double-buffered
                 + 2 * tco * K * 2 + 2 * tco * 2 * 4
                 + 256 * 1024)                   # stats + slack
    vmem_limit = int(min(64 * 2**20, max(32 * 2**20, 2 * vmem_need)))

    kernel = _make_kernel(inv_hw=1.0 / HW, n_hw=n_hw, thw=thw)

    out = pl.pallas_call(
        kernel,
        out_shape=jax.ShapeDtypeStruct((N, C_out, hw_pad), out_dtype),
        grid_spec=pltpu.PrefetchScalarGridSpec(
            num_scalar_prefetch=0,
            grid=(N, n_co, n_hw),
            in_specs=[
                pl.BlockSpec((pl.Squeezed(), K, thw),
                             lambda n, co, hw: (n, 0, hw)),
                pl.BlockSpec((tco, K), lambda n, co, hw: (co, 0)),
                pl.BlockSpec((tco, 2), lambda n, co, hw: (co, 0)),
            ],
            out_specs=pl.BlockSpec((pl.Squeezed(), tco, hw_pad),
                                   lambda n, co, hw: (n, co, 0)),
            scratch_shapes=[
                pltpu.VMEM((n_hw, tco, thw), jnp.float32),
                pltpu.VMEM((tco, 1), jnp.float32),
                pltpu.VMEM((tco, 1), jnp.float32),
            ],
        ),
        compiler_params=pltpu.CompilerParams(
            dimension_semantics=("parallel", "parallel", "arbitrary"),
            vmem_limit_bytes=vmem_limit,
            allow_input_fusion=[True, False, False],
        ),
    )(patches, w2d, gb)

    if hw_pad != HW:
        out = out[:, :, :HW]
    return out.reshape(N, C_out, H_out, W_out)


def _reference(x, weight, gamma, beta, stride=2):
    xp = jnp.pad(x, ((0, 0), (0, 0), (1, 1), (1, 1)), mode="edge")
    y = jax.lax.conv_general_dilated(
        xp, weight, window_strides=(stride, stride), padding="VALID",
        dimension_numbers=("NCHW", "OIHW", "NCHW"))
    mean = jnp.mean(y, axis=(2, 3), keepdims=True)
    var = jnp.var(y, axis=(2, 3), keepdims=True)
    yn = (y - mean) * jax.lax.rsqrt(var + 1e-5)
    yn = yn * gamma.reshape(1, -1, 1, 1) + beta.reshape(1, -1, 1, 1)
    return jnp.where(yn >= 0, yn, 0.1 * yn)


if __name__ == "__main__":
    key = jax.random.PRNGKey(0)
    kx, kw = jax.random.split(key)

    N, C_in, H, W = 2, 4, 16, 16
    C_out = 8

    x = jax.random.normal(kx, (N, C_in, H, W), dtype=jnp.float32)
    # Deterministic synthetic conv weight (module has no bias).
    weight = 0.1 * jax.random.normal(kw, (C_out, C_in, 3, 3), dtype=jnp.float32)
    # InstanceNorm2d(affine=True) init: weight=1, bias=0 (PyTorch default).
    gamma = jnp.ones((C_out,), dtype=jnp.float32)
    beta = jnp.zeros((C_out,), dtype=jnp.float32)

    fwd = jax.jit(functools.partial(conv3x3_forward, stride=2))
    y = fwd(x, weight, gamma, beta)
    jax.block_until_ready(y)
    assert y.shape == (N, C_out, 8, 8), y.shape

    # Loose tolerance: bf16 MXU operands vs. f32 XLA reference.
    y_ref = _reference(x, weight, gamma, beta, stride=2)
    err = float(jnp.max(jnp.abs(y.astype(jnp.float32) - y_ref)))
    assert err < 1e-1, err

    print("KERNEL_OK")
</pallas_src>

<mosaic_0001>
module attributes {stable_mosaic.version = 11 : i64} {
  func.func @kernel(%arg0: i32, %arg1: i32, %arg2: i32, %arg3: memref<1x36x128xbf16, #tpu.memory_space<vmem>>, %arg4: memref<8x36xbf16, #tpu.memory_space<vmem>>, %arg5: memref<8x2xf32, #tpu.memory_space<vmem>>, %arg6: memref<1x8x128xf32, #tpu.memory_space<vmem>>, %arg7: memref<1x8x128xf32, #tpu.memory_space<vmem>>, %arg8: memref<8x1xf32, #tpu.memory_space<vmem>>, %arg9: memref<8x1xf32, #tpu.memory_space<vmem>>) attributes {dimension_semantics = [#tpu.dimension_semantics<parallel>, #tpu.dimension_semantics<parallel>, #tpu.dimension_semantics<arbitrary>], iteration_bounds = array<i64: 2, 1, 1>, scalar_prefetch = 0 : i64, scratch_operands = 3 : i64, tpu.core_type = #tpu.core_type<tc>, window_params = [{transform_indices = @transform_0, window_bounds = array<i64: 1, 36, 128>}, {transform_indices = @transform_1, window_bounds = array<i64: 8, 36>}, {transform_indices = @transform_2, window_bounds = array<i64: 8, 2>}, {transform_indices = @transform_3, window_bounds = array<i64: 1, 8, 128>}]} {
    %c0 = arith.constant 0 : index
    %c0_0 = arith.constant 0 : index
    %0 = vector.load %arg4[%c0, %c0_0] : memref<8x36xbf16, #tpu.memory_space<vmem>>, vector<8x36xbf16>
    %c0_1 = arith.constant 0 : index
    %c0_2 = arith.constant 0 : index
    %c0_3 = arith.constant 0 : index
    %1 = vector.load %arg3[%c0_1, %c0_2, %c0_3] : memref<1x36x128xbf16, #tpu.memory_space<vmem>>, vector<1x36x128xbf16>
    %2 = vector.shape_cast %1 : vector<1x36x128xbf16> to vector<36x128xbf16>
    %cst = arith.constant dense<0.000000e+00> : vector<8x128xf32>
    %3 = tpu.matmul %0, %2, %cst {dimension_numbers = #tpu.dot_dimension_numbers<[1], [0], [0], [1], [0, 0, 1, 1], [], []>} : vector<8x36xbf16>, vector<36x128xbf16>, vector<8x128xf32> -> vector<8x128xf32>
    %4 = arith.index_cast %arg2 : i32 to index
    %c0_4 = arith.constant 0 : index
    %c0_5 = arith.constant 0 : index
    %5 = vector.load %arg7[%4, %c0_4, %c0_5] : memref<1x8x128xf32, #tpu.memory_space<vmem>>, vector<1x8x128xf32>
    %6 = vector.shape_cast %5 : vector<1x8x128xf32> to vector<8x128xf32>
    %7 = vector.shape_cast %3 : vector<8x128xf32> to vector<1x8x128xf32>
    tpu.vector_store %arg7[%4, %c0_4, %c0_5], %7 {strides = array<i32>} : memref<1x8x128xf32, #tpu.memory_space<vmem>>, vector<1x8x128xf32>,
    %c0_i32 = arith.constant 0 : i32
    %8 = arith.cmpi eq, %arg2, %c0_i32 : i32
    %9 = arith.extui %8 : i1 to i32
    %c0_i32_6 = arith.constant 0 : i32
    %10 = arith.cmpi ne, %9, %c0_i32_6 : i32
    scf.if %10 {
      %cst_19 = arith.constant 0.000000e+00 : f32
      %25 = vector.broadcast %cst_19 : f32 to vector<8x1xf32>
      %c0_20 = arith.constant 0 : index
      %c0_21 = arith.constant 0 : index
      %26 = vector.load %arg8[%c0_20, %c0_21] : memref<8x1xf32, #tpu.memory_space<vmem>>, vector<8x1xf32>
      tpu.vector_store %arg8[%c0_20, %c0_21], %25 {strides = array<i32>} : memref<8x1xf32, #tpu.memory_space<vmem>>, vector<8x1xf32>,
      %cst_22 = arith.constant 0.000000e+00 : f32
      %27 = vector.broadcast %cst_22 : f32 to vector<8x1xf32>
      %c0_23 = arith.constant 0 : index
      %c0_24 = arith.constant 0 : index
      %28 = vector.load %arg9[%c0_23, %c0_24] : memref<8x1xf32, #tpu.memory_space<vmem>>, vector<8x1xf32>
      tpu.vector_store %arg9[%c0_23, %c0_24], %27 {strides = array<i32>} : memref<8x1xf32, #tpu.memory_space<vmem>>, vector<8x1xf32>,
    } else {
    }
    %c0_7 = arith.constant 0 : index
    %c0_8 = arith.constant 0 : index
    %11 = vector.load %arg8[%c0_7, %c0_8] : memref<8x1xf32, #tpu.memory_space<vmem>>, vector<8x1xf32>
    %cst_9 = arith.constant dense<0.000000e+00> : vector<8xf32>
    %12 = vector.multi_reduction <add>, %3, %cst_9 [1] : vector<8x128xf32> to vector<8xf32>
    %13 = vector.shape_cast %12 : vector<8xf32> to vector<8x1xf32>
    %14 = arith.addf %11, %13 : vector<8x1xf32>
    %c0_10 = arith.constant 0 : index
    %c0_11 = arith.constant 0 : index
    %15 = vector.load %arg8[%c0_10, %c0_11] : memref<8x1xf32, #tpu.memory_space<vmem>>, vector<8x1xf32>
    tpu.vector_store %arg8[%c0_10, %c0_11], %14 {strides = array<i32>} : memref<8x1xf32, #tpu.memory_space<vmem>>, vector<8x1xf32>,
    %c0_12 = arith.constant 0 : index
    %c0_13 = arith.constant 0 : index
    %16 = vector.load %arg9[%c0_12, %c0_13] : memref<8x1xf32, #tpu.memory_space<vmem>>, vector<8x1xf32>
    %17 = arith.mulf %3, %3 : vector<8x128xf32>
    %cst_14 = arith.constant dense<0.000000e+00> : vector<8xf32>
    %18 = vector.multi_reduction <add>, %17, %cst_14 [1] : vector<8x128xf32> to vector<8xf32>
    %19 = vector.shape_cast %18 : vector<8xf32> to vector<8x1xf32>
    %20 = arith.addf %16, %19 : vector<8x1xf32>
    %c0_15 = arith.constant 0 : index
    %c0_16 = arith.constant 0 : index
    %21 = vector.load %arg9[%c0_15, %c0_16] : memref<8x1xf32, #tpu.memory_space<vmem>>, vector<8x1xf32>
    tpu.vector_store %arg9[%c0_15, %c0_16], %20 {strides = array<i32>} : memref<8x1xf32, #tpu.memory_space<vmem>>, vector<8x1xf32>,
    %c0_i32_17 = arith.constant 0 : i32
    %22 = arith.cmpi eq, %arg2, %c0_i32_17 : i32
    %23 = arith.extui %22 : i1 to i32
    %c0_i32_18 = arith.constant 0 : i32
    %24 = arith.cmpi ne, %23, %c0_i32_18 : i32
    scf.if %24 {
      %c0_19 = arith.constant 0 : index
      %c0_20 = arith.constant 0 : index
      %25 = vector.load %arg8[%c0_19, %c0_20] : memref<8x1xf32, #tpu.memory_space<vmem>>, vector<8x1xf32>
      %cst_21 = arith.constant 1.562500e-02 : f32
      %26 = vector.broadcast %cst_21 : f32 to vector<8x1xf32>
      %27 = arith.mulf %25, %26 : vector<8x1xf32>
      %c0_22 = arith.constant 0 : index
      %c0_23 = arith.constant 0 : index
      %28 = vector.load %arg9[%c0_22, %c0_23] : memref<8x1xf32, #tpu.memory_space<vmem>>, vector<8x1xf32>
      %cst_24 = arith.constant 1.562500e-02 : f32
      %29 = vector.broadcast %cst_24 : f32 to vector<8x1xf32>
      %30 = arith.mulf %28, %29 : vector<8x1xf32>
      %31 = arith.mulf %27, %27 : vector<8x1xf32>
      %32 = arith.subf %30, %31 : vector<8x1xf32>
      %cst_25 = arith.constant 0.000000e+00 : f32
      %33 = vector.broadcast %cst_25 : f32 to vector<8x1xf32>
      %34 = arith.maximumf %32, %33 : vector<8x1xf32>
      %c0_26 = arith.constant 0 : index
      %c0_27 = arith.constant 0 : index
      %35 = vector.load %arg5[%c0_26, %c0_27] : memref<8x2xf32, #tpu.memory_space<vmem>>, vector<8x1xf32>
      %cst_28 = arith.constant 9.99999974E-6 : f32
      %36 = vector.broadcast %cst_28 : f32 to vector<8x1xf32>
      %37 = arith.addf %34, %36 : vector<8x1xf32>
      %38 = math.rsqrt %37 : vector<8x1xf32>
      %39 = arith.mulf %35, %38 : vector<8x1xf32>
      %c0_29 = arith.constant 0 : index
      %c1 = arith.constant 1 : index
      %40 = vector.load %arg5[%c0_29, %c1] : memref<8x2xf32, #tpu.memory_space<vmem>>, vector<8x1xf32>
      %41 = arith.mulf %27, %39 : vector<8x1xf32>
      %42 = arith.subf %40, %41 : vector<8x1xf32>
      %c0_30 = arith.constant 0 : index
      %c0_31 = arith.constant 0 : index
      %c0_32 = arith.constant 0 : index
      %43 = vector.load %arg7[%c0_30, %c0_31, %c0_32] : memref<1x8x128xf32, #tpu.memory_space<vmem>>, vector<1x8x128xf32>
      %44 = vector.shape_cast %43 : vector<1x8x128xf32> to vector<8x128xf32>
      %45 = vector.broadcast %39 : vector<8x1xf32> to vector<8x128xf32>
      %46 = arith.mulf %44, %45 : vector<8x128xf32>
      %47 = vector.broadcast %42 : vector<8x1xf32> to vector<8x128xf32>
      %48 = arith.addf %46, %47 : vector<8x128xf32>
      %cst_33 = arith.constant 1.000000e-01 : f32
      %49 = vector.broadcast %cst_33 : f32 to vector<8x128xf32>
      %50 = arith.mulf %49, %48 : vector<8x128xf32>
      %51 = arith.maximumf %48, %50 : vector<8x128xf32>
      %c0_34 = arith.constant 0 : index
      %c0_35 = arith.constant 0 : index
      %c0_36 = arith.constant 0 : index
      %52 = vector.load %arg6[%c0_34, %c0_35, %c0_36] : memref<1x8x128xf32, #tpu.memory_space<vmem>>, vector<1x8x128xf32>
      %53 = vector.shape_cast %52 : vector<1x8x128xf32> to vector<8x128xf32>
      %54 = vector.shape_cast %51 : vector<8x128xf32> to vector<1x8x128xf32>
      tpu.vector_store %arg6[%c0_34, %c0_35, %c0_36], %54 {strides = array<i32>} : memref<1x8x128xf32, #tpu.memory_space<vmem>>, vector<1x8x128xf32>,
    } else {
    }
    return
  }
  func.func @transform_0(%arg0: i32, %arg1: i32, %arg2: i32) -> (i32, i32, i32) {
    %c0_i32 = arith.constant 0 : i32
    %c0_i32_0 = arith.constant 0 : i32
    return %arg0, %c0_i32, %arg2 : i32, i32, i32
  }
  func.func @transform_1(%arg0: i32, %arg1: i32, %arg2: i32) -> (i32, i32) {
    %c0_i32 = arith.constant 0 : i32
    %c0_i32_0 = arith.constant 0 : i32
    return %arg1, %c0_i32 : i32, i32
  }
  func.func @transform_2(%arg0: i32, %arg1: i32, %arg2: i32) -> (i32, i32) {
    %c0_i32 = arith.constant 0 : i32
    %c0_i32_0 = arith.constant 0 : i32
    return %arg1, %c0_i32 : i32, i32
  }
  func.func @transform_3(%arg0: i32, %arg1: i32, %arg2: i32) -> (i32, i32, i32) {
    %c0_i32 = arith.constant 0 : i32
    %c0_i32_0 = arith.constant 0 : i32
    return %arg0, %arg1, %c0_i32 : i32, i32, i32
  }
}

</mosaic_0001>

<llo_original>
// kernel: conv3x3_forward.2
$region0: #{conv3x3_forward.2}
  #allocation0 [shape = 'u32[]', space=smem, size = 0x4, offset = 0x4, fixed_abs, tag = 'smem constant byte address 0x4 - core index']
  #allocation1 [shape = 'u32[72,128]{1,0:T(1,128)}', space=vmem, size = 0x9000, scoped, tag = 'internal scratch']
  #allocation2 [shape = 'f32[1,8,128]{2,1,0:T(8,128)}', space=vmem, size = 0x1000, scoped, tag = 'scratch operand']
  #allocation3 [shape = 'f32[8,1]{1,0:T(8,128)}', space=vmem, size = 0x1000, scoped, tag = 'scratch operand']
  #allocation4 [shape = 'f32[8,1]{1,0:T(8,128)}', space=vmem, size = 0x1000, scoped, tag = 'scratch operand']
  #allocation5 [shape = 'u32[2048]{0}', space=vmem, size = 0x2000, scoped, tag = 'scoped memory for conv3x3_forward.2']
  #allocation6 [shape = 'u32[2048]{0}', space=vmem, size = 0x2000, scoped, tag = 'scoped memory for conv3x3_forward.2']
  #allocation7 [shape = 'u32[2048]{0}', space=vmem, size = 0x2000, scoped, tag = 'scoped memory for conv3x3_forward.2']
  #allocation8 [shape = 'u32[2048]{0}', space=vmem, size = 0x2000, scoped, tag = 'scoped memory for conv3x3_forward.2']
  #allocation9 [shape = 'u32[2048]{0}', space=vmem, size = 0x2000, scoped, tag = 'scoped memory for conv3x3_forward.2']
  %s0 = inlined_call_operand.vmem [shape: bf16[8,36], index: 0, kind: input, shape index: {}]
  %s1 = inlined_call_operand.vmem [shape: f32[8,2], index: 1, kind: input, shape index: {}]
  %s2 = inlined_call_operand.vmem [shape: bf16[2,36,64], index: 2, kind: input, shape index: {}]
  %s3 = inlined_call_operand.<no memory space> [shape: bf16[], index: 3, kind: input, shape index: {}]
  %s4 = inlined_call_operand.vmem [shape: f32[2,8,128], index: 4, kind: output, shape index: {}]
  %s5 = sld [smem:[#allocation0]]
  $region53: #{conv3x3_forward.2} parent=0
    _
  %s7 = ssub.s32 1, %s5
  %s8 = scalar_select 0, %s7, %s5
  %v9 = vstv %s3
  %v10 = vunpack.i.l.bf16 %v9
  %v12 = vunpack.i.h.bf16 %v9
  loop: start=0, step=1, limit=4
  $region2: #{conv3x3_forward.2} parent=0 // loop_pre_header
    _
  $region3: #{conv3x3_forward.2} parent=0 // loop_header
    %s15 = sphi 0, %s19
    %p16 = scmp.ge.s32.totalorder %s15, 4
    %s22 = sphi 0, %s41
    %s23 = sphi 0, %s37
    %s24 = sphi 0, %s33
    %s25 = sphi 0, %s22
    %s26 = sphi 0, %s23
    %s27 = sphi 0, %s24
    %s28 = sphi 0, %s25
    %s29 = sphi 0, %s26
    %s30 = sphi 0, %s27
    %s46 = sphi 0, %s48
    %s49 = sphi 0, %s46
    %s50 = sphi 0, %s49
    %s66 = sphi 0, %s50
    %s72 = sphi 0, %s74
    %s75 = sphi 0, %s72
    %s76 = sphi 0, %s75
    %s92 = sphi 0, %s76
    %s98 = sphi 0, %s100
    %s101 = sphi 0, %s98
    %s102 = sphi 0, %s101
    %s118 = sphi 0, %s102
    %s126 = sphi 0, %s128
    %s129 = sphi 0, %s126
    %s130 = sphi 0, %s129
    %s146 = sphi 0, %s130
  $region4: #{conv3x3_forward.2} parent=0 // loop_header_branch
    %18 = sbr.rel (%p16) target = $region8
  $region5: #{conv3x3_forward.2} parent=0 // loop_body
    %s20 = ssub.s32 %s15, 1
    %s21 = ssub.s32 %s15, 2
    %s31 = sadd.s32 1, %s24
    %p32 = scmp.ge.s32.totalorder %s31, 1
    %s33 = scalar_select %p32, 0, %s31
    %s34 = sadd.s32 1, %s23
    %s35 = scalar_select %p32, %s34, %s23
    %p36 = scmp.ge.s32.totalorder %s35, 1
    %s37 = scalar_select %p36, 0, %s35
    %s38 = sadd.s32 1, %s22
    %s39 = scalar_select %p36, %s38, %s22
    %p40 = scmp.ge.s32.totalorder %s39, 2
    %s41 = scalar_select %p40, 0, %s39
    %s42 = ssub.s32 %s22, %s41
    %s43 = ssub.s32 %s24, %s33
    %s44 = sor.u32 %s42, %s43
    %p45 = scmp.eq.s32.totalorder %s44, 0
    %s47 = sadd.s32 %s46, 1
    %s48 = scalar_select %p45, %s46, %s47
    %p51 = pneg %p45
    %p52 = scmp.eq.s32.totalorder %s15, 1
    %p53 = por %p51, %p52
    %p54 = scmp.ne.s32.totalorder %s46, %s49
    %p55 = scmp.eq.s32.totalorder %s15, 0
    %p56 = por %p54, %p55
    %p57 = scmp.ne.s32.totalorder %s46, %s49
    %p58 = scmp.eq.s32.totalorder %s20, 1
    %p59 = por %p57, %p58
    %p60 = scmp.ne.s32.totalorder %s49, %s50
    %p61 = scmp.eq.s32.totalorder %s20, 0
    %p62 = por %p60, %p61
    %p63 = scmp.ne.s32.totalorder %s49, %s50
    %p64 = scmp.eq.s32.totalorder %s21, 1
    %p65 = por %p63, %p64
    %p67 = scmp.ne.s32.totalorder %s50, %s66
    %p68 = scmp.eq.s32.totalorder %s21, 0
    %p69 = por %p67, %p68
    %s70 = ssub.s32 %s23, %s37
    %p71 = scmp.eq.s32.totalorder %s70, 0
    %s73 = sadd.s32 %s72, 1
    %s74 = scalar_select %p71, %s72, %s73
    %p77 = pneg %p71
    %p78 = scmp.eq.s32.totalorder %s15, 1
    %p79 = por %p77, %p78
    %p80 = scmp.ne.s32.totalorder %s72, %s75
    %p81 = scmp.eq.s32.totalorder %s15, 0
    %p82 = por %p80, %p81
    %p83 = scmp.ne.s32.totalorder %s72, %s75
    %p84 = scmp.eq.s32.totalorder %s20, 1
    %p85 = por %p83, %p84
    %p86 = scmp.ne.s32.totalorder %s75, %s76
    %p87 = scmp.eq.s32.totalorder %s20, 0
    %p88 = por %p86, %p87
    %p89 = scmp.ne.s32.totalorder %s75, %s76
    %p90 = scmp.eq.s32.totalorder %s21, 1
    %p91 = por %p89, %p90
    %p93 = scmp.ne.s32.totalorder %s76, %s92
    %p94 = scmp.eq.s32.totalorder %s21, 0
    %p95 = por %p93, %p94
    %s96 = ssub.s32 %s23, %s37
    %p97 = scmp.eq.s32.totalorder %s96, 0
    %s99 = sadd.s32 %s98, 1
    %s100 = scalar_select %p97, %s98, %s99
    %p103 = pneg %p97
    %p104 = scmp.eq.s32.totalorder %s15, 1
    %p105 = por %p103, %p104
    %p106 = scmp.ne.s32.totalorder %s98, %s101
    %p107 = scmp.eq.s32.totalorder %s15, 0
    %p108 = por %p106, %p107
    %p109 = scmp.ne.s32.totalorder %s98, %s101
    %p110 = scmp.eq.s32.totalorder %s20, 1
    %p111 = por %p109, %p110
    %p112 = scmp.ne.s32.totalorder %s101, %s102
    %p113 = scmp.eq.s32.totalorder %s20, 0
    %p114 = por %p112, %p113
    %p115 = scmp.ne.s32.totalorder %s101, %s102
    %p116 = scmp.eq.s32.totalorder %s21, 1
    %p117 = por %p115, %p116
    %p119 = scmp.ne.s32.totalorder %s102, %s118
    %p120 = scmp.eq.s32.totalorder %s21, 0
    %p121 = por %p119, %p120
    %s122 = ssub.s32 %s22, %s41
    %s123 = ssub.s32 %s23, %s37
    %s124 = sor.u32 %s122, %s123
    %p125 = scmp.eq.s32.totalorder %s124, 0
    %s127 = sadd.s32 %s126, 1
    %s128 = scalar_select %p125, %s126, %s127
    %p131 = pneg %p125
    %p132 = scmp.eq.s32.totalorder %s15, 1
    %p133 = por %p131, %p132
    %p134 = scmp.ne.s32.totalorder %s126, %s129
    %p135 = scmp.eq.s32.totalorder %s15, 0
    %p136 = por %p134, %p135
    %p137 = scmp.ne.s32.totalorder %s126, %s129
    %p138 = scmp.eq.s32.totalorder %s20, 1
    %p139 = por %p137, %p138
    %p140 = scmp.ne.s32.totalorder %s129, %s130
    %p141 = scmp.eq.s32.totalorder %s20, 0
    %p142 = por %p140, %p141
    %p143 = scmp.ne.s32.totalorder %s129, %s130
    %p144 = scmp.eq.s32.totalorder %s21, 1
    %p145 = por %p143, %p144
    %p147 = scmp.ne.s32.totalorder %s130, %s146
    %p148 = scmp.eq.s32.totalorder %s21, 0
    %p149 = por %p147, %p148
    %p150 = scmp.le.s32.totalorder 1, %s15
    %p151 = scmp.lt.s32.totalorder %s15, 3
    %p152 = pnand %p150, %p151
    %p153 = pneg %p152
    // Predicated region
    $region9: #{conv3x3_forward.2} parent=5 // pred_check
      _
    $region10: #{conv3x3_forward.2} parent=5 // pred_check_branch
      %155 = sbr.rel (%p152) target = $region12
    $region11: #{conv3x3_forward.2} parent=5 // pred_region
      %s156 = ssub.s32 %s15, 1
      // Predicated region
      $region13: #{conv3x3_forward.2} parent=11 // pred_check
        %p157 = pneg %p88
      $region14: #{conv3x3_forward.2} parent=11 // pred_check_branch
        %159 = sbr.rel (%p157) target = $region16
      $region15: #{conv3x3_forward.2} parent=11 // pred_region
        %p160 = scmp.lt.s32.totalorder %s26, 0
        %s161 = scalar_select %p160, %s26, 0
        %s162 = smul.addr %s161, 4
        %s163 = scalar_lea.vmem %s0, %s162
      $region16: #{conv3x3_forward.2} parent=11 // pred_fallthru
        _
      // Predicated region
      $region17: #{conv3x3_forward.2} parent=11 // pred_check
        %p164 = pneg %p114
      $region18: #{conv3x3_forward.2} parent=11 // pred_check_branch
        %166 = sbr.rel (%p164) target = $region20
      $region19: #{conv3x3_forward.2} parent=11 // pred_region
        %p167 = scmp.lt.s32.totalorder %s26, 0
        %s168 = scalar_select %p167, %s26, 0
        %s169 = smul.addr %s168, 8
        %s170 = scalar_lea.vmem %s1, %s169
      $region20: #{conv3x3_forward.2} parent=11 // pred_fallthru
        _
    $region12: #{conv3x3_forward.2} parent=5 // pred_fallthru
      _
    %p171 = scmp.lt.s32.totalorder %s15, 2
    // Predicated region
    $region21: #{conv3x3_forward.2} parent=5 // pred_check
      %p172 = pneg %p171
    $region22: #{conv3x3_forward.2} parent=5 // pred_check_branch
      %174 = sbr.rel (%p172) target = $region24
    $region23: #{conv3x3_forward.2} parent=5 // pred_region
      // Predicated region
      $region25: #{conv3x3_forward.2} parent=23 // pred_check
        %p175 = pneg %p56
      $region26: #{conv3x3_forward.2} parent=23 // pred_check_branch
        %177 = sbr.rel (%p175) target = $region28
      $region27: #{conv3x3_forward.2} parent=23 // pred_region
        %s178 = ssub.s32 1, %s24
        %s179 = smul.u32 20, %s178
        %p180 = scmp.lt.s32.totalorder %s22, 1
        %s181 = scalar_select %p180, %s22, 1
        %p182 = scmp.lt.s32.totalorder %s24, 0
        %s183 = scalar_select %p182, %s24, 0
        %s184 = smul.addr %s181, 5
        %s185 = sadd.s32 %s183, %s184
        %s186 = smul.addr %s185, 4
        %s187 = scalar_lea.vmem %s2, %s186
        %s188 = ssub.s32 1, %s24
        %s189 = smul.u32 20, %s188
      $region28: #{conv3x3_forward.2} parent=23 // pred_fallthru
        _
    $region24: #{conv3x3_forward.2} parent=5 // pred_fallthru
      _
    %p190 = scmp.le.s32.totalorder 1, %s15
    %p191 = scmp.lt.s32.totalorder %s15, 3
    %p192 = pnand %p190, %p191
    %p193 = pneg %p192
    // Predicated region
    $region29: #{conv3x3_forward.2} parent=5 // pred_check
      _
    $region30: #{conv3x3_forward.2} parent=5 // pred_check_branch
      %195 = sbr.rel (%p192) target = $region32
    $region31: #{conv3x3_forward.2} parent=5 // pred_region
      #allocation10 [shape = 'u8[10240]{0}', space=vmem, size = 0x2800, dematerialized = true, scoped, tag = 'FusionAdapter Buffer %fusion.1 = bf16[2,36,128]{2,1,0:T(8,128)(2,1)} fusion(%param_2.24, %param_3.15), kind=kLoop, calls=%fused_computation.12.clone, metadata={op_name="jit(conv3x3_forward)/jit(_pad)/pad" stack_frame_id=10}']
      %s196 = ssub.s32 %s15, 1
      %s197 = ssub.s32 1, %s27
      %s198 = smul.u32 20, %s197
      %p199 = scmp.lt.s32.totalorder %s25, 1
      %s200 = scalar_select %p199, %s25, 1
      %p201 = scmp.lt.s32.totalorder %s27, 0
      %s202 = scalar_select %p201, %s27, 0
      %s203 = smul.addr %s200, 5
      %s204 = sadd.s32 %s202, %s203
      %s205 = smul.addr %s204, 4
      %s206 = scalar_lea.vmem %s2, %s205
      %p207 = pneg %p62
      %p208 = pneg %p59
      %p209 = scmp.lt.s32.totalorder %s26, 0
      %s210 = scalar_select %p209, %s26, 0
      %s211 = smul.addr %s210, 4
      %s212 = scalar_lea.vmem %s0, %s211
      %p213 = pneg %p88
      %p214 = pneg %p85
      %p215 = scmp.lt.s32.totalorder %s26, 0
      %s216 = scalar_select %p215, %s26, 0
      %s217 = smul.addr %s216, 8
      %s218 = scalar_lea.vmem %s1, %s217
      %p219 = pneg %p114
      %p220 = pneg %p111
      %p221 = pneg %p142
      %p222 = pneg %p139
      %p223 = scmp.lt.s32.totalorder %s25, 1
      %s224 = scalar_select %p223, %s25, 1
      %p225 = scmp.lt.s32.totalorder %s26, 0
      %s226 = scalar_select %p225, %s26, 0
      %s227 = sadd.s32 %s226, %s224
      %s228 = smul.addr %s227, 8
      %s229 = scalar_lea.vmem %s4, %s228
      %s230 = ssub.s32 1, %s27
      %s231 = smul.u32 20, %s230
      %p232 = scmp.lt.s32.totalorder %s25, 1
      %s233 = scalar_select %p232, %s25, 1
      %p234 = scmp.lt.s32.totalorder %s27, 0
      %s235 = scalar_select %p234, %s27, 0
      %s236 = smul.addr %s233, 5
      %s237 = sadd.s32 %s235, %s236
      %s238 = smul.addr %s237, 4
      %s239 = scalar_lea.vmem %s2, %s238
      %s240 = ssub.s32 1, %s27
      %s241 = smul.u32 20, %s240
      %p242 = scmp.lt.s32.totalorder %s26, 0
      %s243 = scalar_select %p242, %s26, 0
      %s244 = smul.addr %s243, 4
      %s245 = scalar_lea.vmem %s0, %s244
      %p246 = scmp.lt.s32.totalorder %s26, 0
      %s247 = scalar_select %p246, %s26, 0
      %s248 = smul.addr %s247, 8
      %s249 = scalar_lea.vmem %s1, %s248
      %p250 = scmp.lt.s32.totalorder %s25, 1
      %s251 = scalar_select %p250, %s25, 1
      %p252 = scmp.lt.s32.totalorder %s26, 0
      %s253 = scalar_select %p252, %s26, 0
      %s254 = sadd.s32 %s253, %s251
      %s255 = smul.addr %s254, 8
      %s256 = scalar_lea.vmem %s4, %s255
      %s257 = ssub.s32 0, %s27
      %p258 = scmp.lt.s32.totalorder %s257, 0
      %s259 = scalar_select %p258, 0, 255
      %s260 = sshrl.u32 %s259, 1
      %s261 = sor.u32 %s259, %s260
      %s262 = sand.u32 %s261, 85
      %s263 = sshrl.u32 %s262, 1
      %s264 = sor.u32 %s262, %s263
      %s265 = sand.u32 51, %s264
      %s266 = sshrl.u32 %s265, 2
      %s267 = sor.u32 %s265, %s266
      %s268 = sand.u32 15, %s267
      %v269 = vld [vmem:[%s239] sm:%s268]
      %v270 = vunpack.c.l.bf16 %v269
      %v271 = vunpack.c.h.bf16 %v269
      %s272 = ssub.s32 0, %s27
      %v273 = vstv %s272
      %vm274 = vcmp.lt.s32.totalorder %v273, 0
      %v275 = vsel %vm274, %v10, %v270
      %v276 = vlaneseq
      %v277 = vshrl.u32 %v276, 7
      %vm279 = vcmp.lt.s32.totalorder %v277, 36
      %v280 = vsel %vm279, %v275, %v10
      %s281 = smul.addr %s27, 128
      %v282 = vlaneseq
      %v283 = vand.u32 %v282, 127
      %v284 = vstv %s281
      %v285 = vadd.s32 %v283, %v284
      %vm286 = vcmp.lt.s32.totalorder %v285, 64
      %v287 = vsel %vm286, %v280, %v10
      %v288 = vpack.c.bf16 0.0, %v287
      %s290 = ssub.s32 16, 1
      %291 = vst [vmem:[#allocation10] sm:%s290] %v288
      %s292 = scalar_lea.vmem %s239, 4
      %s293 = ssub.s32 0, %s27
      %p294 = scmp.lt.s32.totalorder %s293, 0
      %s295 = scalar_select %p294, 0, 255
      %s296 = sshrl.u32 %s295, 1
      %s297 = sor.u32 %s295, %s296
      %s298 = sand.u32 %s297, 85
      %s299 = sshrl.u32 %s298, 1
      %s300 = sor.u32 %s298, %s299
      %s301 = sand.u32 51, %s300
      %s302 = sshrl.u32 %s301, 2
      %s303 = sor.u32 %s301, %s302
      %s304 = sand.u32 15, %s303
      %v305 = vld [vmem:[%s292] sm:%s304]
      %v306 = vunpack.c.l.bf16 %v305
      %v307 = vunpack.c.h.bf16 %v305
      %s308 = ssub.s32 0, %s27
      %v309 = vstv %s308
      %vm310 = vcmp.lt.s32.totalorder %v309, 0
      %v311 = vsel %vm310, %v10, %v306
      %v312 = vlaneseq
      %v313 = vshrl.u32 %v312, 7
      %v314 = vadd.s32 %v313, 8
      %vm315 = vcmp.lt.s32.totalorder %v314, 36
      %v316 = vsel %vm315, %v311, %v10
      %s317 = smul.addr %s27, 128
      %v318 = vlaneseq
      %v319 = vand.u32 %v318, 127
      %v320 = vstv %s317
      %v321 = vadd.s32 %v319, %v320
      %vm322 = vcmp.lt.s32.totalorder %v321, 64
      %v323 = vsel %vm322, %v316, %v10
      %s324 = scalar_lea.vmem [#allocation10], 4
      %v325 = vpack.c.bf16 0.0, %v323
      %s327 = ssub.s32 16, 1
      %328 = vst [vmem:[%s324] sm:%s327] %v325
      %s329 = scalar_lea.vmem %s239, 8
      %s330 = ssub.s32 0, %s27
      %p331 = scmp.lt.s32.totalorder %s330, 0
      %s332 = scalar_select %p331, 0, 255
      %s333 = sshrl.u32 %s332, 1
      %s334 = sor.u32 %s332, %s333
      %s335 = sand.u32 %s334, 85
      %s336 = sshrl.u32 %s335, 1
      %s337 = sor.u32 %s335, %s336
      %s338 = sand.u32 51, %s337
      %s339 = sshrl.u32 %s338, 2
      %s340 = sor.u32 %s338, %s339
      %s341 = sand.u32 15, %s340
      %v342 = vld [vmem:[%s329] sm:%s341]
      %v343 = vunpack.c.l.bf16 %v342
      %v344 = vunpack.c.h.bf16 %v342
      %s345 = ssub.s32 0, %s27
      %v346 = vstv %s345
      %vm347 = vcmp.lt.s32.totalorder %v346, 0
      %v348 = vsel %vm347, %v10, %v343
      %v349 = vlaneseq
      %v350 = vshrl.u32 %v349, 7
      %v351 = vadd.s32 %v350, 16
      %vm352 = vcmp.lt.s32.totalorder %v351, 36
      %v353 = vsel %vm352, %v348, %v10
      %s354 = smul.addr %s27, 128
      %v355 = vlaneseq
      %v356 = vand.u32 %v355, 127
      %v357 = vstv %s354
      %v358 = vadd.s32 %v356, %v357
      %vm359 = vcmp.lt.s32.totalorder %v358, 64
      %v360 = vsel %vm359, %v353, %v10
      %s361 = scalar_lea.vmem [#allocation10], 8
      %v362 = vpack.c.bf16 0.0, %v360
      %s364 = ssub.s32 16, 1
      %365 = vst [vmem:[%s361] sm:%s364] %v362
      %s366 = scalar_lea.vmem %s239, 12
      %s367 = ssub.s32 0, %s27
      %p368 = scmp.lt.s32.totalorder %s367, 0
      %s369 = scalar_select %p368, 0, 255
      %s370 = sshrl.u32 %s369, 1
      %s371 = sor.u32 %s369, %s370
      %s372 = sand.u32 %s371, 85
      %s373 = sshrl.u32 %s372, 1
      %s374 = sor.u32 %s372, %s373
      %s375 = sand.u32 51, %s374
      %s376 = sshrl.u32 %s375, 2
      %s377 = sor.u32 %s375, %s376
      %s378 = sand.u32 15, %s377
      %v379 = vld [vmem:[%s366] sm:%s378]
      %v380 = vunpack.c.l.bf16 %v379
      %v381 = vunpack.c.h.bf16 %v379
      %s382 = ssub.s32 0, %s27
      %v383 = vstv %s382
      %vm384 = vcmp.lt.s32.totalorder %v383, 0
      %v385 = vsel %vm384, %v10, %v380
      %v386 = vlaneseq
      %v387 = vshrl.u32 %v386, 7
      %v388 = vadd.s32 %v387, 24
      %vm389 = vcmp.lt.s32.totalorder %v388, 36
      %v390 = vsel %vm389, %v385, %v10
      %s391 = smul.addr %s27, 128
      %v392 = vlaneseq
      %v393 = vand.u32 %v392, 127
      %v394 = vstv %s391
      %v395 = vadd.s32 %v393, %v394
      %vm396 = vcmp.lt.s32.totalorder %v395, 64
      %v397 = vsel %vm396, %v390, %v10
      %s398 = scalar_lea.vmem [#allocation10], 12
      %v399 = vpack.c.bf16 0.0, %v397
      %s401 = ssub.s32 16, 1
      %402 = vst [vmem:[%s398] sm:%s401] %v399
      %s403 = scalar_lea.vmem %s239, 16
      %s404 = ssub.s32 0, %s27
      %p405 = scmp.lt.s32.totalorder %s404, 0
      %s406 = scalar_select %p405, 0, 255
      %s407 = sshrl.u32 %s406, 1
      %s408 = sor.u32 %s406, %s407
      %s409 = sand.u32 %s408, 85
      %s410 = sshrl.u32 %s409, 1
      %s411 = sor.u32 %s409, %s410
      %s412 = sand.u32 51, %s411
      %s413 = sshrl.u32 %s412, 2
      %s414 = sor.u32 %s412, %s413
      %s415 = sand.u32 15, %s414
      %v416 = vld [vmem:[%s403] sm:%s415]
      %v417 = vunpack.c.l.bf16 %v416
      %v418 = vunpack.c.h.bf16 %v416
      %s419 = ssub.s32 0, %s27
      %v420 = vstv %s419
      %vm421 = vcmp.lt.s32.totalorder %v420, 0
      %v422 = vsel %vm421, %v10, %v417
      %v423 = vlaneseq
      %v424 = vshrl.u32 %v423, 7
      %v425 = vadd.s32 %v424, 32
      %vm426 = vcmp.lt.s32.totalorder %v425, 36
      %v427 = vsel %vm426, %v422, %v10
      %s428 = smul.addr %s27, 128
      %v429 = vlaneseq
      %v430 = vand.u32 %v429, 127
      %v431 = vstv %s428
      %v432 = vadd.s32 %v430, %v431
      %vm433 = vcmp.lt.s32.totalorder %v432, 64
      %v434 = vsel %vm433, %v427, %v10
      %s435 = scalar_lea.vmem [#allocation10], 16
      %v436 = vpack.c.bf16 0.0, %v434
      %s438 = ssub.s32 16, 1
      %439 = vst [vmem:[%s435] sm:%s438] %v436
      %v441 = vld [vmem:[%s245] sm:$0xf]
      %v442 = vld [vmem:[#allocation10] sm:$0xf]
      %v443 = vld [vmem:[#allocation10 + $0x4] sm:$0xf]
      %v444 = vld [vmem:[#allocation10 + $0x8] sm:$0xf]
      %v445 = vld [vmem:[#allocation10 + $0xc] sm:$0xf]
      %v446 = vld [vmem:[#allocation10 + $0x10] sm:$0x3]
      %v452 = vunpack.c.l.b16 %v442
      %v453 = vunpack.c.l.b16 %v443
      %v454 = vunpack.c.l.b16 %v444
      %v455 = vunpack.c.l.b16 %v445
      %v456 = vunpack.c.l.b16 %v446
      %v457 = vpack.c.b16 %v453, %v452
      %v458 = vpack.c.b16 %v455, %v454
      %v459 = vpack.c.b16 %v456, %v456
      %vm462 = vcmask 293888
      %v464 = vsel %vm462, %v441, 0
      %vm466 = vcmask 1041408
      %v468 = vsel %vm466, %v459, 0
      %470 = vmatpush.bf16.msra.mxu0 0
      %471 = vmatpush.bf16.msra.mxu0 0
      %472 = vmatpush.bf16.msra.mxu0 0
      %473 = vmatpush.bf16.msra.mxu0 0
      %474 = vmatpush.bf16.msra.mxu0 0
      %475 = vmatpush.bf16.msra.mxu0 %v468
      %476 = vmatpush.bf16.msra.mxu0 %v458
      %477 = vmatpush.bf16.msra.mxu0 %v457
      %478 = vmatmul.bf16.gmra.mxu0 %v464
      %v479 = vpop.f32.mrf.mxu0
      %v480 = vadd.f32 0.0, %v479
      %v481 = vpop.f32.mrf.mxu0
      %482 = vdwg.mxu0
      %s483 = smul.u32 %s27, 8
      %s484 = scalar_lea.vmem [#allocation2], %s483
      %485 = vst [vmem:[%s484] sm:$0xff] %v480
      %p486 = scmp.eq.s32.totalorder %s27, 0
      // Predicated region
      $region33: #{conv3x3_forward.2} parent=31 // pred_check
        %p487 = pneg %p486
      $region34: #{conv3x3_forward.2} parent=31 // pred_check_branch
        %489 = sbr.rel (%p487) target = $region36
      $region35: #{conv3x3_forward.2} parent=31 // pred_region
        %vm490 = vcmask 7168
        %491 = vst.msk [vmem:[#allocation3] sm:$0xff] %vm490, 0.0
        %492 = vst.msk [vmem:[#allocation4] sm:$0xff] %vm490, 0.0
      $region36: #{conv3x3_forward.2} parent=31 // pred_fallthru
        _
      %v493 = vld [vmem:[#allocation3] sm:$0xff]
      %494 = vadd.xlane.f32.xlu0 %v480
      %v495 = vpop.xlane.xlu0 %494
      %v496 = vadd.f32 %v493, %v495
      %vm497 = vcmask 7168
      %498 = vst.msk [vmem:[#allocation3] sm:$0xff] %vm497, %v496
      %v499 = vld [vmem:[#allocation4] sm:$0xff]
      %v500 = vmul.f32 %v480, %v480
      %501 = vadd.xlane.f32.xlu0 %v500
      %v502 = vpop.xlane.xlu0 %501
      %v503 = vadd.f32 %v499, %v502
      %504 = vst.msk [vmem:[#allocation4] sm:$0xff] %vm497, %v503
      // Predicated region
      $region37: #{conv3x3_forward.2} parent=31 // pred_check
        %p505 = pneg %p486
      $region38: #{conv3x3_forward.2} parent=31 // pred_check_branch
        %507 = sbr.rel (%p505) target = $region40
      $region39: #{conv3x3_forward.2} parent=31 // pred_region
        %v508 = vld [vmem:[#allocation3] sm:$0xff]
        %v509 = vmul.f32 %v508, 0.015625
        %v510 = vld [vmem:[#allocation4] sm:$0xff]
        %v511 = vmul.f32 %v510, 0.015625
        %v512 = vmul.f32 %v509, %v509
        %v513 = vsub.f32 %v511, %v512
        %v514 = vmax.f32 %v513, 0.0
        %v515 = vld [vmem:[%s249] sm:$0xff]
        %v516 = vadd.f32 %v514, 1e-05
        %v517 = vrsqrt.pop %v516
        %v518 = vmul.f32 %v517, %v516
        %v519 = vmul.f32 %v518, %v517
        %v520 = vmul.f32 0.5, %v519
        %v521 = vsub.f32 1.5, %v520
        %v522 = vmul.f32 %v517, %v521
        %vm523 = vweird.f32 %v516
        %vm524 = vweird.f32 %v517
        %vm525 = vmor %vm523, %vm524
        %v526 = vsel %vm525, %v517, %v522
        %v527 = vmul.f32 %v515, %v526
        %v528 = vmul.f32 %v509, %v527
        %530 = vrot.lane.b32.xlu0 %v528, 1
        %v531 = vpop.permute.xlu0 %530
        %v533 = vsub.f32 %v515, %v531
        %v534 = vld [vmem:[#allocation2] sm:$0xff]
        %536 = vset.pattern.permute.xlu0 0
        %537 = vperm.xlu0 %536, %v527
        %v538 = vpop.permute.xlu0 %537
        %v540 = vmul.f32 %v534, %v538
        %542 = vset.pattern.permute.xlu0 1
        %543 = vperm.xlu0 %542, %v533
        %v544 = vpop.permute.xlu0 %543
        %v546 = vadd.f32 %v540, %v544
        %v547 = vmul.f32 %v546, 0.1
        %v548 = vmax.f32 %v546, %v547
        %549 = vst [vmem:[%s256] sm:$0xff] %v548
      $region40: #{conv3x3_forward.2} parent=31 // pred_fallthru
        _
      %p550 = scmp.lt.s32.totalorder %s25, 1
      %s551 = scalar_select %p550, %s25, 1
      %p552 = scmp.lt.s32.totalorder %s26, 0
      %s553 = scalar_select %p552, %s26, 0
      %s554 = sadd.s32 %s553, %s551
      %s555 = smul.addr %s554, 8
      %s556 = scalar_lea.vmem %s4, %s555
      // Predicated region
      $region41: #{conv3x3_forward.2} parent=31 // pred_check
        %p557 = pneg %p139
      $region42: #{conv3x3_forward.2} parent=31 // pred_check_branch
        %559 = sbr.rel (%p557) target = $region44
      $region43: #{conv3x3_forward.2} parent=31 // pred_region
        _
      $region44: #{conv3x3_forward.2} parent=31 // pred_fallthru
        _
    $region32: #{conv3x3_forward.2} parent=5 // pred_fallthru
      _
    %p560 = scmp.le.s32.totalorder 2, %s15
    // Predicated region
    $region45: #{conv3x3_forward.2} parent=5 // pred_check
      %p561 = pneg %p560
    $region46: #{conv3x3_forward.2} parent=5 // pred_check_branch
      %563 = sbr.rel (%p561) target = $region48
    $region47: #{conv3x3_forward.2} parent=5 // pred_region
      %s564 = ssub.s32 %s15, 2
      // Predicated region
      $region49: #{conv3x3_forward.2} parent=47 // pred_check
        %p565 = pneg %p145
      $region50: #{conv3x3_forward.2} parent=47 // pred_check_branch
        %567 = sbr.rel (%p565) target = $region52
      $region51: #{conv3x3_forward.2} parent=47 // pred_region
        %p568 = scmp.lt.s32.totalorder %s28, 1
        %s569 = scalar_select %p568, %s28, 1
        %p570 = scmp.lt.s32.totalorder %s29, 0
        %s571 = scalar_select %p570, %s29, 0
        %s572 = sadd.s32 %s571, %s569
        %s573 = smul.addr %s572, 8
        %s574 = scalar_lea.vmem %s4, %s573
      $region52: #{conv3x3_forward.2} parent=47 // pred_fallthru
        _
    $region48: #{conv3x3_forward.2} parent=5 // pred_fallthru
      _
  $region6: #{conv3x3_forward.2} parent=0 // loop_footer
    %s19 = sadd.s32 1, %s15
  $region7: #{conv3x3_forward.2} parent=0 // loop_footer_branch
    %14 = sbr.rel target = $region3
  $region8: #{conv3x3_forward.2} parent=0 // loop_exit
    _

</llo_original>
